<compile_context>
chip_gen: v5e
topology: v5e:2x2
jax: 0.10.0
libtpu: 0.0.40
codegen_flags: <defaults>
</compile_context>

<pallas_src>
import functools

import jax
import jax.numpy as jnp
from jax.experimental import pallas as pl
from jax.experimental.pallas import tpu as pltpu


def _round_up(x, m):
    return (x + m - 1) // m * m


def _sublane_multiple(dtype):
    # Native second-minor tile: 8 for 4-byte, 16 for 2-byte, 32 for 1-byte dtypes.
    return max(8, 32 // jnp.dtype(dtype).itemsize)


def _vmem_params():
    """(vmem_limit_bytes, tile_budget_bytes) derived from this chip's VMEM."""
    cap = 64 << 20  # conservative fallback: v7x per-TensorCore VMEM
    try:
        info = pltpu.get_tpu_info()
        cap = int(getattr(info, "vmem_capacity_bytes", cap)) or cap
    except Exception:
        pass
    limit = min(int(cap * 0.60), 96 << 20)   # ~38 MiB on v7x, ~76 MiB on v5e/v6e
    budget = min(int(cap * 0.45), 64 << 20)  # ~28 MiB on v7x, ~57 MiB on v5e/v6e
    return limit, budget


def _choose_row_tile(rows, lane_width, in_itemsize, out_itemsize, budget, sub):
    """Largest row tile that fits the VMEM budget (memory-bound streaming)."""
    # Double-buffered input + output blocks (pipeline) plus ~2 resident
    # (ROW_TILE, lane_width) f32 temporaries inside the kernel body.
    bytes_per_row = 2 * lane_width * (in_itemsize + out_itemsize) + 2 * lane_width * 4
    tile = budget // max(bytes_per_row, 1)
    tile = min(tile, _round_up(rows, sub))
    # For large inputs keep >=16 grid steps (>=8 per TensorCore on 2-TC chips)
    # so the "parallel" axis shards well and DMA ramp-up/drain stays hidden.
    if rows >= 16 * 512:
        tile = min(tile, _round_up(pl.cdiv(rows, 16), sub))
    return max((tile // sub) * sub, sub)


def _layernorm_kernel(x_ref, a_ref, b_ref, o_ref, *, eps, n_features):
    # x_ref: (ROW_TILE, F)   a_ref/b_ref: (1, F) float32   o_ref: (ROW_TILE, F)
    x = x_ref[...].astype(jnp.float32)
    mean = jnp.mean(x, axis=-1, keepdims=True)
    xc = x - mean
    # torch.std default: unbiased (Bessel, N-1); eps is added to std, not var.
    var = jnp.sum(xc * xc, axis=-1, keepdims=True) * jnp.float32(1.0 / (n_features - 1))
    std = jnp.sqrt(var)
    inv = pl.reciprocal(std + jnp.float32(eps), approx=False)
    o_ref[...] = (xc * inv * a_ref[...] + b_ref[...]).astype(o_ref.dtype)


def _layernorm_kernel_packed(seg_ref, x_ref, a_ref, b_ref, o_ref, *, eps, n_features):
    # k = 128 // F rows are packed along the lane axis. seg_ref is the
    # (k*F, k*F) block-diagonal ones matrix: x @ seg computes each row
    # segment's sum and broadcasts it back across that segment's F lanes,
    # keeping everything lane-dense (no lane-sparse reductions / masked stores).
    x = x_ref[...].astype(jnp.float32)
    seg = seg_ref[...]
    mean = jnp.dot(x, seg, preferred_element_type=jnp.float32) * jnp.float32(1.0 / n_features)
    xc = x - mean
    ssq = jnp.dot(xc * xc, seg, preferred_element_type=jnp.float32)
    std = jnp.sqrt(ssq * jnp.float32(1.0 / (n_features - 1)))
    inv = pl.reciprocal(std + jnp.float32(eps), approx=False)
    o_ref[...] = (xc * inv * a_ref[...] + b_ref[...]).astype(o_ref.dtype)


def layer_norm(x, a_2, b_2, eps=1e-6, row_tile=None):
    """LayerNorm over the last axis of x. x: (..., F), a_2/b_2: (F,)."""
    orig_shape = x.shape
    features = orig_shape[-1]
    assert features >= 2, "unbiased std (N-1) requires at least 2 features"

    x2 = x.reshape(-1, features)
    rows = x2.shape[0]

    # Hoist the f32 cast of the affine params out of the kernel body.
    a2 = a_2.astype(jnp.float32).reshape(1, features)
    b2 = b_2.astype(jnp.float32).reshape(1, features)

    # Lane-pack skinny feature dims so the streamed blocks stay lane-dense.
    pack = 1
    if features < 128 and 128 % features == 0:
        k = 128 // features
        if rows % k == 0 and rows >= k:
            pack = k
    # TODO(synk): when rows % (128 // F) != 0 we fall back to the lane-sparse
    # path; a production kernel would pad F (or rows) once at model setup.

    vmem_limit, tile_budget = _vmem_params()
    sub = _sublane_multiple(x2.dtype)

    if pack > 1:
        lane_width = pack * features
        rows_eff = rows // pack
        x2 = x2.reshape(rows_eff, lane_width)           # free, row-major
        a2 = jnp.tile(a2, (1, pack))
        b2 = jnp.tile(b2, (1, pack))
        seg_ids = jnp.arange(lane_width, dtype=jnp.int32) // features
        seg = (seg_ids[:, None] == seg_ids[None, :]).astype(jnp.float32)
    else:
        lane_width = features
        rows_eff = rows

    if row_tile is None:
        row_tile = _choose_row_tile(rows_eff, lane_width, x2.dtype.itemsize,
                                    x.dtype.itemsize, tile_budget, sub)

    grid = (pl.cdiv(rows_eff, row_tile),)  # ragged tail: OOB reads are per-row
    #                                        garbage, OOB writes are dropped.
    out_sds = jax.ShapeDtypeStruct((rows_eff, lane_width), x.dtype)
    row_spec = pl.BlockSpec((row_tile, lane_width), lambda i: (i, 0))
    vec_spec = pl.BlockSpec((1, lane_width), lambda i: (0, 0))
    cparams = pltpu.CompilerParams(
        dimension_semantics=("parallel",),
        vmem_limit_bytes=vmem_limit,
    )

    if pack > 1:
        kernel = functools.partial(_layernorm_kernel_packed, eps=eps, n_features=features)
        out = pl.pallas_call(
            kernel,
            out_shape=out_sds,
            grid_spec=pltpu.PrefetchScalarGridSpec(
                num_scalar_prefetch=0,
                grid=grid,
                in_specs=[
                    pl.BlockSpec((lane_width, lane_width), lambda i: (0, 0)),
                    row_spec,
                    vec_spec,
                    vec_spec,
                ],
                out_specs=row_spec,
            ),
            compiler_params=cparams,
        )(seg, x2, a2, b2)
    else:
        kernel = functools.partial(_layernorm_kernel, eps=eps, n_features=features)
        out = pl.pallas_call(
            kernel,
            out_shape=out_sds,
            grid_spec=pltpu.PrefetchScalarGridSpec(
                num_scalar_prefetch=0,
                grid=grid,
                in_specs=[row_spec, vec_spec, vec_spec],
                out_specs=row_spec,
            ),
            compiler_params=cparams,
        )(x2, a2, b2)

    return out.reshape(orig_shape)


def layer_norm_ref(x, a_2, b_2, eps=1e-6):
    xf = x.astype(jnp.float32)
    mean = jnp.mean(xf, axis=-1, keepdims=True)
    std = jnp.std(xf, axis=-1, keepdims=True, ddof=1)
    return (a_2 * (xf - mean) / (std + eps) + b_2).astype(x.dtype)


if __name__ == "__main__":
    key = jax.random.PRNGKey(0)
    batch, seq, hidden = 2, 8, 32

    k0, k1, k2, k3 = jax.random.split(key, 4)
    x = jax.random.normal(k0, (batch, seq, hidden), dtype=jnp.float32)

    # Deterministic parameter init, matching nn.Parameter(ones/zeros(features)).
    a_2 = jnp.ones((hidden,), dtype=jnp.float32)
    b_2 = jnp.zeros((hidden,), dtype=jnp.float32)

    out = jax.block_until_ready(layer_norm(x, a_2, b_2, eps=1e-6))
    ref = layer_norm_ref(x, a_2, b_2, eps=1e-6)
    assert out.shape == x.shape
    assert jnp.allclose(out, ref, atol=1e-5, rtol=1e-5)

    # Second check: row count not divisible by the lane-pack factor (exercises
    # the fallback path + ragged OOB tail block) with non-trivial scale/shift.
    x2 = jax.random.normal(k1, (3, 5, hidden), dtype=jnp.float32)
    a2p = jax.random.normal(k2, (hidden,), dtype=jnp.float32)
    b2p = jax.random.normal(k3, (hidden,), dtype=jnp.float32)
    out2 = jax.block_until_ready(layer_norm(x2, a2p, b2p, eps=1e-6))
    ref2 = layer_norm_ref(x2, a2p, b2p, eps=1e-6)
    assert out2.shape == x2.shape
    assert jnp.allclose(out2, ref2, atol=1e-5, rtol=1e-5)

    print("KERNEL_OK")
</pallas_src>

<mosaic_0001>
module attributes {stable_mosaic.version = 11 : i64} {
  func.func @_layernorm_kernel_packed(%arg0: i32, %arg1: memref<128x128xf32, #tpu.memory_space<vmem>>, %arg2: memref<8x128xf32, #tpu.memory_space<vmem>>, %arg3: memref<1x128xf32, #tpu.memory_space<vmem>>, %arg4: memref<1x128xf32, #tpu.memory_space<vmem>>, %arg5: memref<8x128xf32, #tpu.memory_space<vmem>>) attributes {dimension_semantics = [#tpu.dimension_semantics<parallel>], iteration_bounds = array<i64: 1>, scalar_prefetch = 0 : i64, scratch_operands = 0 : i64, tpu.core_type = #tpu.core_type<tc>, window_params = [{pipeline_mode = #tpu.pipeline_mode<synchronous>, transform_indices = @transform_0, window_bounds = array<i64: 128, 128>}, {transform_indices = @transform_1, window_bounds = array<i64: 8, 128>}, {pipeline_mode = #tpu.pipeline_mode<synchronous>, transform_indices = @transform_2, window_bounds = array<i64: 1, 128>}, {pipeline_mode = #tpu.pipeline_mode<synchronous>, transform_indices = @transform_3, window_bounds = array<i64: 1, 128>}, {transform_indices = @transform_4, window_bounds = array<i64: 8, 128>}]} {
    %c0 = arith.constant 0 : index
    %c0_0 = arith.constant 0 : index
    %0 = vector.load %arg2[%c0, %c0_0] : memref<8x128xf32, #tpu.memory_space<vmem>>, vector<8x128xf32>
    %c0_1 = arith.constant 0 : index
    %c0_2 = arith.constant 0 : index
    %1 = vector.load %arg1[%c0_1, %c0_2] : memref<128x128xf32, #tpu.memory_space<vmem>>, vector<128x128xf32>
    %cst = arith.constant dense<0.000000e+00> : vector<8x128xf32>
    %2 = tpu.matmul %0, %1, %cst {dimension_numbers = #tpu.dot_dimension_numbers<[1], [0], [0], [1], [0, 0, 1, 1], [], []>} : vector<8x128xf32>, vector<128x128xf32>, vector<8x128xf32> -> vector<8x128xf32>
    %cst_3 = arith.constant 3.125000e-02 : f32
    %3 = vector.broadcast %cst_3 : f32 to vector<8x128xf32>
    %4 = arith.mulf %2, %3 : vector<8x128xf32>
    %5 = arith.subf %0, %4 : vector<8x128xf32>
    %6 = arith.mulf %5, %5 : vector<8x128xf32>
    %cst_4 = arith.constant dense<0.000000e+00> : vector<8x128xf32>
    %7 = tpu.matmul %6, %1, %cst_4 {dimension_numbers = #tpu.dot_dimension_numbers<[1], [0], [0], [1], [0, 0, 1, 1], [], []>} : vector<8x128xf32>, vector<128x128xf32>, vector<8x128xf32> -> vector<8x128xf32>
    %cst_5 = arith.constant 0.0322580636 : f32
    %8 = vector.broadcast %cst_5 : f32 to vector<8x128xf32>
    %9 = arith.mulf %7, %8 : vector<8x128xf32>
    %10 = math.sqrt %9 : vector<8x128xf32>
    %cst_6 = arith.constant 9.99999997E-7 : f32
    %11 = vector.broadcast %cst_6 : f32 to vector<8x128xf32>
    %12 = arith.addf %10, %11 : vector<8x128xf32>
    %13 = tpu.reciprocal %12 : vector<8x128xf32> -> vector<8x128xf32>
    %14 = arith.mulf %5, %13 : vector<8x128xf32>
    %c0_7 = arith.constant 0 : index
    %c0_8 = arith.constant 0 : index
    %15 = vector.load %arg3[%c0_7, %c0_8] : memref<1x128xf32, #tpu.memory_space<vmem>>, vector<1x128xf32>
    %16 = vector.broadcast %15 : vector<1x128xf32> to vector<8x128xf32>
    %17 = arith.mulf %14, %16 : vector<8x128xf32>
    %c0_9 = arith.constant 0 : index
    %c0_10 = arith.constant 0 : index
    %18 = vector.load %arg4[%c0_9, %c0_10] : memref<1x128xf32, #tpu.memory_space<vmem>>, vector<1x128xf32>
    %19 = vector.broadcast %18 : vector<1x128xf32> to vector<8x128xf32>
    %20 = arith.addf %17, %19 : vector<8x128xf32>
    %c0_11 = arith.constant 0 : index
    %c0_12 = arith.constant 0 : index
    %21 = vector.load %arg5[%c0_11, %c0_12] : memref<8x128xf32, #tpu.memory_space<vmem>>, vector<8x128xf32>
    tpu.vector_store %arg5[%c0_11, %c0_12], %20 {strides = array<i32>} : memref<8x128xf32, #tpu.memory_space<vmem>>, vector<8x128xf32>,
    return
  }
  func.func @transform_0(%arg0: i32) -> (i32, i32) {
    %c0_i32 = arith.constant 0 : i32
    %c0_i32_0 = arith.constant 0 : i32
    %c0_i32_1 = arith.constant 0 : i32
    return %c0_i32, %c0_i32_0 : i32, i32
  }
  func.func @transform_1(%arg0: i32) -> (i32, i32) {
    %c0_i32 = arith.constant 0 : i32
    %c0_i32_0 = arith.constant 0 : i32
    return %arg0, %c0_i32 : i32, i32
  }
  func.func @transform_2(%arg0: i32) -> (i32, i32) {
    %c0_i32 = arith.constant 0 : i32
    %c0_i32_0 = arith.constant 0 : i32
    %c0_i32_1 = arith.constant 0 : i32
    return %c0_i32, %c0_i32_0 : i32, i32
  }
  func.func @transform_3(%arg0: i32) -> (i32, i32) {
    %c0_i32 = arith.constant 0 : i32
    %c0_i32_0 = arith.constant 0 : i32
    %c0_i32_1 = arith.constant 0 : i32
    return %c0_i32, %c0_i32_0 : i32, i32
  }
  func.func @transform_4(%arg0: i32) -> (i32, i32) {
    %c0_i32 = arith.constant 0 : i32
    %c0_i32_0 = arith.constant 0 : i32
    return %arg0, %c0_i32 : i32, i32
  }
}

</mosaic_0001>

<llo_original>
// kernel: tpu_custom_call.1
$region0: #{tpu_custom_call.1}
  #allocation0 [shape = 'u32[]', space=smem, size = 0x4, offset = 0x4, fixed_abs, tag = 'smem constant byte address 0x4 - core index']
  #allocation1 [shape = 'u32[72,128]{1,0:T(1,128)}', space=vmem, size = 0x9000, scoped, tag = 'internal scratch']
  %s0 = inlined_call_operand.hbm [shape: f32[128,128], index: 0, kind: input, shape index: {}]
  %s1 = inlined_call_operand.hbm [shape: f32[4,128], index: 1, kind: input, shape index: {}]
  %s2 = inlined_call_operand.vmem [shape: f32[1,128], index: 2, kind: input, shape index: {}]
  %s3 = inlined_call_operand.vmem [shape: f32[1,128], index: 3, kind: input, shape index: {}]
  %s4 = inlined_call_operand.hbm [shape: f32[4,128], index: 4, kind: output, shape index: {}]
  %s5 = sld [smem:[#allocation0]]
  $region34: #{tpu_custom_call.1} parent=0
    _
  %s7 = ssub.s32 1, %s5
  %s8 = scalar_select 0, %s7, %s5
  $region1: #{tpu_custom_call.1} parent=0
    #allocation2 [shape = 'u8[65536]{0}', space=vmem, size = 0x10000, scoped, tag = 'input window, operand 0, single buffered']
    #allocation3 [shape = 's32[1]{0}', space=sflag, size = 0x4, scoped, tag = 'scoped memory for tpu_custom_call.1']
    #allocation4 [shape = 's32[1]{0}', space=sflag, size = 0x4, scoped, tag = 'scoped memory for tpu_custom_call.1']
    #allocation5 [shape = 'u8[4096]{0}', space=vmem, size = 0x1000, scoped, tag = 'input window, operand 1, single buffered']
    #allocation6 [shape = 's32[1]{0}', space=sflag, size = 0x4, scoped, tag = 'scoped memory for tpu_custom_call.1']
    #allocation7 [shape = 'u8[4096]{0}', space=vmem, size = 0x1000, scoped, tag = 'output window, operand 0, single buffered']
    %9 = vsyncpa [#allocation3], 0
    %10 = vsyncpa [#allocation6], 0
    %11 = vsyncpa [#allocation4], 0
    // Predicated region
    $region2: #{tpu_custom_call.1} parent=1 // pred_check
      _
    $region3: #{tpu_custom_call.1} parent=1 // pred_check_branch
      %13 = sbr.rel (0) target = $region5
    $region4: #{tpu_custom_call.1} parent=1 // pred_region
      %15 = vsyncadd [#allocation3], 0
      %s16 = sshll.u32 %s0, 4
      %s17 = int_to_ptr.hbm [resolvable:$true] %s16
      %s18 = sshll.u32 [#allocation2], 4
      %s19 = int_to_ptr.vmem [resolvable:$true] %s18
      %24 = dma.hbm_to_vmem [thread:$0]  %s17, 2048, %s19, [#allocation3], 128, 128, 8
    $region5: #{tpu_custom_call.1} parent=1 // pred_fallthru
      _
    // Predicated region
    $region6: #{tpu_custom_call.1} parent=1 // pred_check
      _
    $region7: #{tpu_custom_call.1} parent=1 // pred_check_branch
      %26 = sbr.rel (0) target = $region9
    $region8: #{tpu_custom_call.1} parent=1 // pred_region
      %28 = vsyncadd [#allocation6], 64
      %s29 = sshll.u32 %s1, 4
      %s30 = int_to_ptr.hbm [resolvable:$true] %s29
      %s31 = sshll.u32 [#allocation5], 4
      %s32 = int_to_ptr.vmem [resolvable:$true] %s31
      %37 = dma.hbm_to_vmem [thread:$0]  %s30, 64, %s32, [#allocation6], 64, 64, 4
    $region9: #{tpu_custom_call.1} parent=1 // pred_fallthru
      _
    // Predicated region
    $region10: #{tpu_custom_call.1} parent=1 // pred_check
      _
    $region11: #{tpu_custom_call.1} parent=1 // pred_check_branch
      %39 = sbr.rel (0) target = $region13
    $region12: #{tpu_custom_call.1} parent=1 // pred_region
      _
    $region13: #{tpu_custom_call.1} parent=1 // pred_fallthru
      _
    // Predicated region
    $region14: #{tpu_custom_call.1} parent=1 // pred_check
      _
    $region15: #{tpu_custom_call.1} parent=1 // pred_check_branch
      %41 = sbr.rel (0) target = $region17
    $region16: #{tpu_custom_call.1} parent=1 // pred_region
      _
    $region17: #{tpu_custom_call.1} parent=1 // pred_fallthru
      _
    // Predicated region
    $region18: #{tpu_custom_call.1} parent=1 // pred_check
      _
    $region19: #{tpu_custom_call.1} parent=1 // pred_check_branch
      %43 = sbr.rel (0) target = $region21
    $region20: #{tpu_custom_call.1} parent=1 // pred_region
      %45 = dma.done [#allocation3], 2048
    $region21: #{tpu_custom_call.1} parent=1 // pred_fallthru
      _
    // Predicated region
    $region22: #{tpu_custom_call.1} parent=1 // pred_check
      _
    $region23: #{tpu_custom_call.1} parent=1 // pred_check_branch
      %47 = sbr.rel (0) target = $region25
    $region24: #{tpu_custom_call.1} parent=1 // pred_region
      %49 = dma.done [#allocation6], 128
    $region25: #{tpu_custom_call.1} parent=1 // pred_fallthru
      _
    %v50 = vld [vmem:[#allocation5] sm:$0xff]
    %v51 = vld [vmem:[#allocation2] sm:$0xff]
    %v52 = vld [vmem:[#allocation2 + $0x8] sm:$0xff]
    %v53 = vld [vmem:[#allocation2 + $0x10] sm:$0xff]
    %v54 = vld [vmem:[#allocation2 + $0x18] sm:$0xff]
    %v55 = vld [vmem:[#allocation2 + $0x20] sm:$0xff]
    %v56 = vld [vmem:[#allocation2 + $0x28] sm:$0xff]
    %v57 = vld [vmem:[#allocation2 + $0x30] sm:$0xff]
    %v58 = vld [vmem:[#allocation2 + $0x38] sm:$0xff]
    %v59 = vld [vmem:[#allocation2 + $0x40] sm:$0xff]
    %v60 = vld [vmem:[#allocation2 + $0x48] sm:$0xff]
    %v61 = vld [vmem:[#allocation2 + $0x50] sm:$0xff]
    %v62 = vld [vmem:[#allocation2 + $0x58] sm:$0xff]
    %v63 = vld [vmem:[#allocation2 + $0x60] sm:$0xff]
    %v64 = vld [vmem:[#allocation2 + $0x68] sm:$0xff]
    %v65 = vld [vmem:[#allocation2 + $0x70] sm:$0xff]
    %v66 = vld [vmem:[#allocation2 + $0x78] sm:$0xff]
    %67 = vmatpush.msra.mxu0 %v66
    %68 = vmatpush.msra.mxu0 %v65
    %69 = vmatpush.msra.mxu0 %v64
    %70 = vmatpush.msra.mxu0 %v63
    %71 = vmatpush.msra.mxu0 %v62
    %72 = vmatpush.msra.mxu0 %v61
    %73 = vmatpush.msra.mxu0 %v60
    %74 = vmatpush.msra.mxu0 %v59
    %75 = vmatpush.msra.mxu0 %v58
    %76 = vmatpush.msra.mxu0 %v57
    %77 = vmatpush.msra.mxu0 %v56
    %78 = vmatpush.msra.mxu0 %v55
    %79 = vmatpush.msra.mxu0 %v54
    %80 = vmatpush.msra.mxu0 %v53
    %81 = vmatpush.msra.mxu0 %v52
    %82 = vmatpush.msra.mxu0 %v51
    %83 = vmatmul.f32.gmra.mxu0 %v50
    %v84 = vpop.f32.mrf.mxu0
    %v85 = vadd.f32 0.0, %v84
    %86 = vdwg.mxu0
    %v87 = vmul.f32 %v85, 0.03125
    %v88 = vsub.f32 %v50, %v87
    %v89 = vmul.f32 %v88, %v88
    %90 = vmatpush.msra.mxu0 %v66
    %91 = vmatpush.msra.mxu0 %v65
    %92 = vmatpush.msra.mxu0 %v64
    %93 = vmatpush.msra.mxu0 %v63
    %94 = vmatpush.msra.mxu0 %v62
    %95 = vmatpush.msra.mxu0 %v61
    %96 = vmatpush.msra.mxu0 %v60
    %97 = vmatpush.msra.mxu0 %v59
    %98 = vmatpush.msra.mxu0 %v58
    %99 = vmatpush.msra.mxu0 %v57
    %100 = vmatpush.msra.mxu0 %v56
    %101 = vmatpush.msra.mxu0 %v55
    %102 = vmatpush.msra.mxu0 %v54
    %103 = vmatpush.msra.mxu0 %v53
    %104 = vmatpush.msra.mxu0 %v52
    %105 = vmatpush.msra.mxu0 %v51
    %106 = vmatmul.f32.gmra.mxu0 %v89
    %v107 = vpop.f32.mrf.mxu0
    %v108 = vadd.f32 0.0, %v107
    %109 = vdwg.mxu0
    %v110 = vmul.f32 %v108, 0.032258064
    %v111 = vrsqrt.pop %v110
    %v112 = vmul.f32 %v111, %v110
    %v113 = vmul.f32 %v112, %v111
    %v114 = vmul.f32 0.5, %v113
    %v115 = vsub.f32 1.5, %v114
    %v116 = vmul.f32 %v111, %v115
    %v117 = vmul.f32 %v110, %v116
    %vm118 = vcmp.eq.f32.partialorder %v110, inf
    %v119 = vsel %vm118, %v110, %v117
    %vm120 = vcmp.eq.f32.partialorder %v110, 0.0
    %v121 = vand.u32 %v110, 2147483648
    %v122 = vsel %vm120, %v121, %v119
    %v123 = vadd.f32 %v122, 1e-06
    %v124 = vrcp.pop %v123
    %v125 = vmul.f32 %v123, %v124
    %v126 = vsub.f32 1.0, %v125
    %v127 = vmul.f32 %v124, %v126
    %v128 = vadd.f32 %v124, %v127
    %vm129 = vweird.f32 %v123
    %vm130 = vweird.f32 %v124
    %vm131 = vmor %vm129, %vm130
    %v132 = vsel %vm131, %v124, %v128
    %v133 = vand.u32 2147483647, %v123
    %vm134 = vcmp.eq.f32.partialorder %v133, 8.507059e+37
    %v135 = vand.u32 %v123, 2147483648
    %v136 = vor.u32 1.1754944e-38, %v135
    %v137 = vsel %vm134, %v136, %v132
    %v138 = vmul.f32 %v88, %v137
    %v139 = vld [vmem:[%s2] sm:$0x1]
    %v141 = vperm.slane %v139, 0
    %v143 = vmul.f32 %v138, %v141
    %v144 = vld [vmem:[%s3] sm:$0x1]
    %v146 = vperm.slane %v144, 0
    %v148 = vadd.f32 %v143, %v146
    %149 = vst [vmem:[#allocation7] sm:$0xff] %v148
    // Predicated region
    $region26: #{tpu_custom_call.1} parent=1 // pred_check
      _
    $region27: #{tpu_custom_call.1} parent=1 // pred_check_branch
      %151 = sbr.rel (0) target = $region29
    $region28: #{tpu_custom_call.1} parent=1 // pred_region
      %153 = vsyncadd [#allocation4], 64
      %s154 = sshll.u32 [#allocation7], 4
      %s155 = int_to_ptr.vmem [resolvable:$true] %s154
      %s156 = sshll.u32 %s4, 4
      %s157 = int_to_ptr.hbm [resolvable:$true] %s156
      %162 = dma.vmem_to_hbm [thread:$0]  %s155, 64, %s157, [#allocation4], 64, 64, 4
    $region29: #{tpu_custom_call.1} parent=1 // pred_fallthru
      _
    // Predicated region
    $region30: #{tpu_custom_call.1} parent=1 // pred_check
      _
    $region31: #{tpu_custom_call.1} parent=1 // pred_check_branch
      %164 = sbr.rel (0) target = $region33
    $region32: #{tpu_custom_call.1} parent=1 // pred_region
      %166 = dma.done [#allocation4], 128
    $region33: #{tpu_custom_call.1} parent=1 // pred_fallthru
      _
    %167 = vsyncpa [#allocation3], 1
    %168 = vsyncpa [#allocation6], 1
    %169 = vsyncpa [#allocation4], 1

</llo_original>
